<compile_context>
chip_gen: v7x
topology: tpu7x:2x2x1
jax: 0.10.0
libtpu: 0.0.40
codegen_flags: <defaults>
</compile_context>

<pallas_src>
import functools
from collections import namedtuple

import numpy as np
import jax
import jax.numpy as jnp
from jax.experimental import pallas as pl
from jax.experimental.pallas import tpu as pltpu


_Layer = namedtuple("_Layer", ["K", "d", "P", "Hin", "Win", "Hout", "Wout", "Cin", "Cout"])


def _round_up(x, m):
    return (x + m - 1) // m * m


def _make_fused_kernel(layers, B, S, OFF, ML, SW, W0):
    """Build the fused kernel body. All geometry is static (Python ints)."""
    n = len(layers)

    def kernel(alphas_ref, *refs):
        # refs = [x, (w, b) * n, out, slab * n]
        x_ref = refs[0]
        w_refs = [refs[1 + 2 * i] for i in range(n)]
        b_refs = [refs[2 + 2 * i] for i in range(n)]
        out_ref = refs[1 + 2 * n]
        slab_refs = refs[2 + 2 * n:2 + 3 * n]

        lane = jax.lax.broadcasted_iota(jnp.int32, (1, SW), 1)

        # Stage the (H == 1) input into slab 0: zero padding + all batches packed
        # along lanes (stride S, data offset OFF). Replaces per-layer jnp.pad +
        # HBM round trips of an unfused implementation.
        slab0 = slab_refs[0]
        slab0[...] = jnp.zeros_like(slab0)
        for b in range(B):
            c0 = ML + b * S + OFF
            slab0[0, :, c0:c0 + W0] = x_ref[b]

        for li, g in enumerate(layers):
            w_ref = w_refs[li]
            bias_ref = b_refs[li]
            alpha = alphas_ref[li]                      # PReLU alpha (SMEM scalar)
            src = slab_refs[li]
            is_last = li == n - 1
            if not is_last:
                dst = slab_refs[li + 1]
                dst[...] = jnp.zeros_like(dst)
                # Valid-lane mask of this layer's output: lanes outside it are
                # forced to 0 and double as the next layer's zero padding.
                mask = None
                for b in range(B):
                    lo = b * S + OFF
                    mb = (lane >= lo) & (lane < lo + g.Wout)
                    mask = mb if mask is None else (mask | mb)

            for oh in range(g.Hout):          # static; == 1 for this module's geometry
                contribs = []
                for kh in range(g.K):         # only kernel rows hitting a real input row
                    rin = oh + kh * g.d - g.P
                    if not 0 <= rin < g.Hin:
                        continue
                    # im2col: gather the K width-shifted windows of input row
                    # `rin` into one (K*Cin, SW) patch (in registers, no scratch
                    # round trip), then one MXU matmul over all batches /
                    # output positions at once.
                    patch = jnp.concatenate(
                        [src[rin, :, ML + kw * g.d - g.P:ML + kw * g.d - g.P + SW]
                         for kw in range(g.K)],
                        axis=0)
                    contribs.append(jnp.dot(
                        w_ref[kh],
                        patch.astype(jnp.bfloat16),
                        preferred_element_type=jnp.float32))
                if contribs:
                    acc = contribs[0]
                    for c in contribs[1:]:
                        acc = acc + c
                else:
                    acc = jnp.zeros((g.Cout, SW), jnp.float32)
                acc = acc + bias_ref[...]                          # bias
                acc = jnp.where(acc > 0, acc, alpha * acc)         # PReLU
                if is_last:
                    out_ref[oh, :, :] = acc                        # lane-dense 128-wide store
                else:
                    dst[oh, :, ML:ML + SW] = jnp.where(mask, acc, 0.0)

    return kernel


def decoding_block_forward(x, params, k_sizes, dilation, padding):
    """DecodingBlock.forward: reshape (B,C,F,T)->(B,C*F,1,T), then the whole
    ConvTranspose2d+PReLU stack as ONE fused Pallas kernel."""
    B, C, F, T = x.shape
    n_layers = len(params)

    # Static per-layer geometry (the module's reshape makes H == 1 at the input).
    layers = []
    Hin, Win, Cin = 1, T, C * F
    for (w, _, _), K, d, p in zip(params, k_sizes, dilation, padding):
        assert w.shape[0] == Cin and w.shape[2] == K and w.shape[3] == K
        Cout = int(w.shape[1])
        P = d * (K - 1) - p
        assert P >= 0, "unsupported ConvTranspose2d geometry for this kernel"
        Hout = Hin + d * (K - 1) - 2 * p
        Wout = Win + d * (K - 1) - 2 * p
        assert Hout >= 1 and Wout >= 1
        layers.append(_Layer(K, d, P, Hin, Win, Hout, Wout, Cin, Cout))
        Hin, Win, Cin = Hout, Wout, Cout
    Hlast, Wlast, Clast = Hin, Win, Cin
    layers = tuple(layers)

    # Lane layout: batches packed along lanes at stride S with data offset OFF;
    # ML/MR are slab margins so every shifted conv window is a static in-bounds slice.
    OFF = ML = max(g.P for g in layers)
    MR = max(g.d * (g.K - 1) - g.P for g in layers)
    S = max(max(g.Win + g.P, OFF + g.Win, OFF + g.Wout) for g in layers)
    SW = _round_up(B * S, 128)      # logical (compute/store) width: lane-dense
    SWP = ML + SW + MR              # physical slab width incl. shift margins

    # Parameter prep (tiny one-time glue). ConvTranspose2d weight (Cin,Cout,K,K)
    # -> spatially flipped dilated-conv weight laid out (K_h, Cout, K_w*Cin) in
    # bf16, so each contributing k_h row is a single (Cout, K*Cin) im2col operand.
    x3 = x.reshape(B, C * F, T).astype(jnp.float32)
    alphas = jnp.stack([jnp.asarray(a, dtype=jnp.float32).reshape(())
                        for (_, _, a) in params])
    inputs = [x3]
    in_specs = [pl.BlockSpec((B, C * F, T), lambda i, *_: (0, 0, 0))]
    for (w, b, _), g in zip(params, layers):
        wflip = jnp.flip(w, axis=(2, 3))                               # (Cin,Cout,K,K)
        wblk = jnp.transpose(wflip, (2, 1, 3, 0)).reshape(g.K, g.Cout, g.K * g.Cin)
        inputs.append(wblk.astype(jnp.bfloat16))
        inputs.append(b.reshape(g.Cout, 1).astype(jnp.float32))
        in_specs.append(pl.BlockSpec((g.K, g.Cout, g.K * g.Cin), lambda i, *_: (0, 0, 0)))
        in_specs.append(pl.BlockSpec((g.Cout, 1), lambda i, *_: (0, 0)))

    # VMEM scratch: slab 0 = padded kernel input, slab i = padded output of layer i-1.
    # Everything is a few KiB here; if T were scaled to real audio lengths the
    # width would need 128-column tiling for VMEM.
    scratch_shapes = [pltpu.VMEM((1, C * F, SWP), jnp.float32)]
    for g in layers[:-1]:
        scratch_shapes.append(pltpu.VMEM((g.Hout, g.Cout, SWP), jnp.float32))

    out_slab = pl.pallas_call(
        _make_fused_kernel(layers, B, S, OFF, ML, SW, T),
        out_shape=jax.ShapeDtypeStruct((Hlast, Clast, SW), jnp.float32),
        grid_spec=pltpu.PrefetchScalarGridSpec(
            num_scalar_prefetch=1,            # PReLU alphas -> SMEM scalars
            grid=(1,),                        # single step: whole problem in one launch
            in_specs=in_specs,
            out_specs=pl.BlockSpec((Hlast, Clast, SW), lambda i, *_: (0, 0, 0)),
            scratch_shapes=scratch_shapes,
        ),
        compiler_params=pltpu.CompilerParams(dimension_semantics=("arbitrary",)),
    )(alphas, *inputs)

    # Unpack the per-batch lane chunks and restore NCHW.
    chunks = [out_slab[:, :, b * S + OFF:b * S + OFF + Wlast] for b in range(B)]
    y = jnp.stack(chunks, axis=0)            # (B, Hout, Cout, Wout)
    return jnp.transpose(y, (0, 2, 1, 3))    # (B, Cout, Hout, Wout)


# ----------------------------- reference (numpy) -----------------------------

def _ref_conv_transpose2d(x, w, b, d, p):
    B, Cin, H, W = x.shape
    _, Cout, K, _ = w.shape
    Hout = H - 2 * p + d * (K - 1)
    Wout = W - 2 * p + d * (K - 1)
    y = np.zeros((B, Cout, Hout, Wout), np.float64)
    for ih in range(H):
        for iw in range(W):
            for kh in range(K):
                oh = ih - p + kh * d
                if not (0 <= oh < Hout):
                    continue
                for kw in range(K):
                    ow = iw - p + kw * d
                    if not (0 <= ow < Wout):
                        continue
                    y[:, :, oh, ow] += np.einsum(
                        'bi,io->bo', x[:, :, ih, iw], w[:, :, kh, kw])
    return y + b[None, :, None, None]


def _ref_forward(x, params, dilation, padding):
    B, C, F, T = x.shape
    h = np.asarray(x, np.float64).reshape(B, C * F, 1, T)
    for (w, b, a), d, p in zip(params, dilation, padding):
        h = _ref_conv_transpose2d(h, np.asarray(w, np.float64),
                                  np.asarray(b, np.float64), d, p)
        h = np.where(h > 0, h, float(a) * h)
    return h


# ---------------------------------- main -------------------------------------

if __name__ == "__main__":
    key = jax.random.PRNGKey(0)

    # x is (B, C, F, T); module reshapes to (B, C*F, 1, T), so layer-1 in_channels = C*F.
    B, C, F, T = 2, 4, 4, 16
    channels = [C * F, 8, 4]
    k_sizes = [3, 3]
    dilation = [1, 2]
    padding = [1, 2]

    key, kx = jax.random.split(key)
    x = jax.random.normal(kx, (B, C, F, T), jnp.float32)

    # Deterministic parameter init (ConvTranspose2d weight layout: (Cin, Cout, K, K)).
    params = []
    for i, k in enumerate(k_sizes):
        cin, cout = channels[i], channels[i + 1]
        key, kw_, kb_ = jax.random.split(key, 3)
        w = jax.random.normal(kw_, (cin, cout, k, k), jnp.float32) * 0.1
        b = jax.random.normal(kb_, (cout,), jnp.float32) * 0.1
        a = jnp.float32(0.25)  # nn.PReLU() default single-parameter init
        params.append((w, b, a))

    fwd = jax.jit(functools.partial(decoding_block_forward,
                                    k_sizes=k_sizes, dilation=dilation, padding=padding))
    y = fwd(x, params)
    y = jax.block_until_ready(y)

    y_ref = _ref_forward(np.asarray(x), params, dilation, padding)
    assert y.shape == (B, channels[-1], 1, T), y.shape
    # Tolerance sized for bf16 MXU operands with f32 accumulation.
    np.testing.assert_allclose(np.asarray(y), y_ref, rtol=2e-2, atol=2e-2)

    print("KERNEL_OK")
</pallas_src>

<mosaic_0001>
module attributes {stable_mosaic.version = 11 : i64} {
  func.func @kernel(%arg0: i32, %arg1: memref<2xf32, #tpu.memory_space<smem>>, %arg2: memref<2x16x16xf32, #tpu.memory_space<vmem>>, %arg3: memref<3x8x48xbf16, #tpu.memory_space<vmem>>, %arg4: memref<8x1xf32, #tpu.memory_space<vmem>>, %arg5: memref<3x4x24xbf16, #tpu.memory_space<vmem>>, %arg6: memref<4x1xf32, #tpu.memory_space<vmem>>, %arg7: memref<1x4x128xf32, #tpu.memory_space<vmem>>, %arg8: memref<1x16x132xf32, #tpu.memory_space<vmem>>, %arg9: memref<1x8x132xf32, #tpu.memory_space<vmem>>) attributes {dimension_semantics = [#tpu.dimension_semantics<arbitrary>], iteration_bounds = array<i64: 1>, scalar_prefetch = 1 : i64, scratch_operands = 2 : i64, tpu.core_type = #tpu.core_type<tc>, window_params = [{pipeline_mode = #tpu.pipeline_mode<synchronous>, transform_indices = @transform_0, window_bounds = array<i64: 2, 16, 16>}, {pipeline_mode = #tpu.pipeline_mode<synchronous>, transform_indices = @transform_1, window_bounds = array<i64: 3, 8, 48>}, {pipeline_mode = #tpu.pipeline_mode<synchronous>, transform_indices = @transform_2, window_bounds = array<i64: 8, 1>}, {pipeline_mode = #tpu.pipeline_mode<synchronous>, transform_indices = @transform_3, window_bounds = array<i64: 3, 4, 24>}, {pipeline_mode = #tpu.pipeline_mode<synchronous>, transform_indices = @transform_4, window_bounds = array<i64: 4, 1>}, {pipeline_mode = #tpu.pipeline_mode<synchronous>, transform_indices = @transform_5, window_bounds = array<i64: 1, 4, 128>}]} {
    %0 = tpu.iota {dimensions = array<i32: 1>} : vector<1x128xi32>
    %cst = arith.constant 0.000000e+00 : f32
    %1 = vector.broadcast %cst : f32 to vector<1x16x132xf32>
    %c0 = arith.constant 0 : index
    %c0_0 = arith.constant 0 : index
    %c0_1 = arith.constant 0 : index
    %2 = vector.load %arg8[%c0, %c0_0, %c0_1] : memref<1x16x132xf32, #tpu.memory_space<vmem>>, vector<1x16x132xf32>
    tpu.vector_store %arg8[%c0, %c0_0, %c0_1], %1 {strides = array<i32>} : memref<1x16x132xf32, #tpu.memory_space<vmem>>, vector<1x16x132xf32>,
    %c0_2 = arith.constant 0 : index
    %c0_3 = arith.constant 0 : index
    %c0_4 = arith.constant 0 : index
    %3 = vector.load %arg2[%c0_2, %c0_3, %c0_4] : memref<2x16x16xf32, #tpu.memory_space<vmem>>, vector<1x16x16xf32>
    %4 = vector.shape_cast %3 : vector<1x16x16xf32> to vector<16x16xf32>
    %c0_5 = arith.constant 0 : index
    %c0_6 = arith.constant 0 : index
    %c4 = arith.constant 4 : index
    %5 = vector.load %arg8[%c0_5, %c0_6, %c4] : memref<1x16x132xf32, #tpu.memory_space<vmem>>, vector<1x16x16xf32>
    %6 = vector.shape_cast %5 : vector<1x16x16xf32> to vector<16x16xf32>
    %7 = vector.shape_cast %4 : vector<16x16xf32> to vector<1x16x16xf32>
    tpu.vector_store %arg8[%c0_5, %c0_6, %c4], %7 {strides = array<i32>} : memref<1x16x132xf32, #tpu.memory_space<vmem>>, vector<1x16x16xf32>,
    %c1 = arith.constant 1 : index
    %c0_7 = arith.constant 0 : index
    %c0_8 = arith.constant 0 : index
    %8 = vector.load %arg2[%c1, %c0_7, %c0_8] : memref<2x16x16xf32, #tpu.memory_space<vmem>>, vector<1x16x16xf32>
    %9 = vector.shape_cast %8 : vector<1x16x16xf32> to vector<16x16xf32>
    %c0_9 = arith.constant 0 : index
    %c0_10 = arith.constant 0 : index
    %c22 = arith.constant 22 : index
    %10 = vector.load %arg8[%c0_9, %c0_10, %c22] : memref<1x16x132xf32, #tpu.memory_space<vmem>>, vector<1x16x16xf32>
    %11 = vector.shape_cast %10 : vector<1x16x16xf32> to vector<16x16xf32>
    %12 = vector.shape_cast %9 : vector<16x16xf32> to vector<1x16x16xf32>
    tpu.vector_store %arg8[%c0_9, %c0_10, %c22], %12 {strides = array<i32>} : memref<1x16x132xf32, #tpu.memory_space<vmem>>, vector<1x16x16xf32>,
    %c0_11 = arith.constant 0 : index
    %13 = memref.load %arg1[%c0_11] : memref<2xf32, #tpu.memory_space<smem>>
    %cst_12 = arith.constant 0.000000e+00 : f32
    %14 = vector.broadcast %cst_12 : f32 to vector<1x8x132xf32>
    %c0_13 = arith.constant 0 : index
    %c0_14 = arith.constant 0 : index
    %c0_15 = arith.constant 0 : index
    %15 = vector.load %arg9[%c0_13, %c0_14, %c0_15] : memref<1x8x132xf32, #tpu.memory_space<vmem>>, vector<1x8x132xf32>
    tpu.vector_store %arg9[%c0_13, %c0_14, %c0_15], %14 {strides = array<i32>} : memref<1x8x132xf32, #tpu.memory_space<vmem>>, vector<1x8x132xf32>,
    %c2_i32 = arith.constant 2 : i32
    %16 = vector.broadcast %c2_i32 : i32 to vector<1x128xi32>
    %17 = arith.cmpi sge, %0, %16 : vector<1x128xi32>
    %c18_i32 = arith.constant 18 : i32
    %18 = vector.broadcast %c18_i32 : i32 to vector<1x128xi32>
    %19 = arith.cmpi slt, %0, %18 : vector<1x128xi32>
    %20 = arith.andi %17, %19 : vector<1x128xi1>
    %c20_i32 = arith.constant 20 : i32
    %21 = vector.broadcast %c20_i32 : i32 to vector<1x128xi32>
    %22 = arith.cmpi sge, %0, %21 : vector<1x128xi32>
    %c36_i32 = arith.constant 36 : i32
    %23 = vector.broadcast %c36_i32 : i32 to vector<1x128xi32>
    %24 = arith.cmpi slt, %0, %23 : vector<1x128xi32>
    %25 = arith.andi %22, %24 : vector<1x128xi1>
    %26 = arith.ori %20, %25 : vector<1x128xi1>
    %c0_16 = arith.constant 0 : index
    %c0_17 = arith.constant 0 : index
    %c1_18 = arith.constant 1 : index
    %27 = vector.load %arg8[%c0_16, %c0_17, %c1_18] : memref<1x16x132xf32, #tpu.memory_space<vmem>>, vector<1x16x128xf32>
    %28 = vector.shape_cast %27 : vector<1x16x128xf32> to vector<16x128xf32>
    %c0_19 = arith.constant 0 : index
    %c0_20 = arith.constant 0 : index
    %c2 = arith.constant 2 : index
    %29 = vector.load %arg8[%c0_19, %c0_20, %c2] : memref<1x16x132xf32, #tpu.memory_space<vmem>>, vector<1x16x128xf32>
    %30 = vector.shape_cast %29 : vector<1x16x128xf32> to vector<16x128xf32>
    %c0_21 = arith.constant 0 : index
    %c0_22 = arith.constant 0 : index
    %c3 = arith.constant 3 : index
    %31 = vector.load %arg8[%c0_21, %c0_22, %c3] : memref<1x16x132xf32, #tpu.memory_space<vmem>>, vector<1x16x128xf32>
    %32 = vector.shape_cast %31 : vector<1x16x128xf32> to vector<16x128xf32>
    %33 = tpu.concatenate %28, %30, %32 in 0 : vector<16x128xf32>, vector<16x128xf32>, vector<16x128xf32> -> vector<48x128xf32>
    %c1_23 = arith.constant 1 : index
    %c0_24 = arith.constant 0 : index
    %c0_25 = arith.constant 0 : index
    %34 = vector.load %arg3[%c1_23, %c0_24, %c0_25] : memref<3x8x48xbf16, #tpu.memory_space<vmem>>, vector<1x8x48xbf16>
    %35 = vector.shape_cast %34 : vector<1x8x48xbf16> to vector<8x48xbf16>
    %36 = arith.truncf %33 : vector<48x128xf32> to vector<48x128xbf16>
    %cst_26 = arith.constant dense<0.000000e+00> : vector<8x128xf32>
    %37 = tpu.matmul %35, %36, %cst_26 {dimension_numbers = #tpu.dot_dimension_numbers<[1], [0], [0], [1], [0, 0, 1, 1], [], []>} : vector<8x48xbf16>, vector<48x128xbf16>, vector<8x128xf32> -> vector<8x128xf32>
    %c0_27 = arith.constant 0 : index
    %c0_28 = arith.constant 0 : index
    %38 = vector.load %arg4[%c0_27, %c0_28] : memref<8x1xf32, #tpu.memory_space<vmem>>, vector<8x1xf32>
    %39 = vector.broadcast %38 : vector<8x1xf32> to vector<8x128xf32>
    %40 = arith.addf %37, %39 : vector<8x128xf32>
    %cst_29 = arith.constant 0.000000e+00 : f32
    %41 = vector.broadcast %cst_29 : f32 to vector<8x128xf32>
    %42 = arith.cmpf ogt, %40, %41 : vector<8x128xf32>
    %43 = vector.broadcast %13 : f32 to vector<8x128xf32>
    %44 = arith.mulf %43, %40 : vector<8x128xf32>
    %45 = arith.select %42, %40, %44 : vector<8x128xi1>, vector<8x128xf32>
    %cst_30 = arith.constant 0.000000e+00 : f32
    %46 = vector.shape_cast %26 : vector<1x128xi1> to vector<1x128xi1>
    %47 = vector.broadcast %46 : vector<1x128xi1> to vector<8x128xi1>
    %48 = vector.broadcast %cst_30 : f32 to vector<8x128xf32>
    %49 = arith.select %47, %45, %48 : vector<8x128xi1>, vector<8x128xf32>
    %c0_31 = arith.constant 0 : index
    %c0_32 = arith.constant 0 : index
    %c2_33 = arith.constant 2 : index
    %50 = vector.load %arg9[%c0_31, %c0_32, %c2_33] : memref<1x8x132xf32, #tpu.memory_space<vmem>>, vector<1x8x128xf32>
    %51 = vector.shape_cast %50 : vector<1x8x128xf32> to vector<8x128xf32>
    %52 = vector.shape_cast %49 : vector<8x128xf32> to vector<1x8x128xf32>
    tpu.vector_store %arg9[%c0_31, %c0_32, %c2_33], %52 {strides = array<i32>} : memref<1x8x132xf32, #tpu.memory_space<vmem>>, vector<1x8x128xf32>,
    %c1_34 = arith.constant 1 : index
    %53 = memref.load %arg1[%c1_34] : memref<2xf32, #tpu.memory_space<smem>>
    %c0_35 = arith.constant 0 : index
    %c0_36 = arith.constant 0 : index
    %c0_37 = arith.constant 0 : index
    %54 = vector.load %arg9[%c0_35, %c0_36, %c0_37] : memref<1x8x132xf32, #tpu.memory_space<vmem>>, vector<1x8x128xf32>
    %55 = vector.shape_cast %54 : vector<1x8x128xf32> to vector<8x128xf32>
    %c0_38 = arith.constant 0 : index
    %c0_39 = arith.constant 0 : index
    %c2_40 = arith.constant 2 : index
    %56 = vector.load %arg9[%c0_38, %c0_39, %c2_40] : memref<1x8x132xf32, #tpu.memory_space<vmem>>, vector<1x8x128xf32>
    %57 = vector.shape_cast %56 : vector<1x8x128xf32> to vector<8x128xf32>
    %c0_41 = arith.constant 0 : index
    %c0_42 = arith.constant 0 : index
    %c4_43 = arith.constant 4 : index
    %58 = vector.load %arg9[%c0_41, %c0_42, %c4_43] : memref<1x8x132xf32, #tpu.memory_space<vmem>>, vector<1x8x128xf32>
    %59 = vector.shape_cast %58 : vector<1x8x128xf32> to vector<8x128xf32>
    %60 = tpu.concatenate %55, %57, %59 in 0 : vector<8x128xf32>, vector<8x128xf32>, vector<8x128xf32> -> vector<24x128xf32>
    %c1_44 = arith.constant 1 : index
    %c0_45 = arith.constant 0 : index
    %c0_46 = arith.constant 0 : index
    %61 = vector.load %arg5[%c1_44, %c0_45, %c0_46] : memref<3x4x24xbf16, #tpu.memory_space<vmem>>, vector<1x4x24xbf16>
    %62 = vector.shape_cast %61 : vector<1x4x24xbf16> to vector<4x24xbf16>
    %63 = arith.truncf %60 : vector<24x128xf32> to vector<24x128xbf16>
    %cst_47 = arith.constant dense<0.000000e+00> : vector<4x128xf32>
    %64 = tpu.matmul %62, %63, %cst_47 {dimension_numbers = #tpu.dot_dimension_numbers<[1], [0], [0], [1], [0, 0, 1, 1], [], []>} : vector<4x24xbf16>, vector<24x128xbf16>, vector<4x128xf32> -> vector<4x128xf32>
    %c0_48 = arith.constant 0 : index
    %c0_49 = arith.constant 0 : index
    %65 = vector.load %arg6[%c0_48, %c0_49] : memref<4x1xf32, #tpu.memory_space<vmem>>, vector<4x1xf32>
    %66 = vector.broadcast %65 : vector<4x1xf32> to vector<4x128xf32>
    %67 = arith.addf %64, %66 : vector<4x128xf32>
    %cst_50 = arith.constant 0.000000e+00 : f32
    %68 = vector.broadcast %cst_50 : f32 to vector<4x128xf32>
    %69 = arith.cmpf ogt, %67, %68 : vector<4x128xf32>
    %70 = vector.broadcast %53 : f32 to vector<4x128xf32>
    %71 = arith.mulf %70, %67 : vector<4x128xf32>
    %72 = arith.select %69, %67, %71 : vector<4x128xi1>, vector<4x128xf32>
    %c0_51 = arith.constant 0 : index
    %c0_52 = arith.constant 0 : index
    %c0_53 = arith.constant 0 : index
    %73 = vector.load %arg7[%c0_51, %c0_52, %c0_53] : memref<1x4x128xf32, #tpu.memory_space<vmem>>, vector<1x4x128xf32>
    %74 = vector.shape_cast %73 : vector<1x4x128xf32> to vector<4x128xf32>
    %75 = vector.shape_cast %72 : vector<4x128xf32> to vector<1x4x128xf32>
    tpu.vector_store %arg7[%c0_51, %c0_52, %c0_53], %75 {strides = array<i32>} : memref<1x4x128xf32, #tpu.memory_space<vmem>>, vector<1x4x128xf32>,
    return
  }
  func.func @transform_0(%arg0: i32, %arg1: memref<2xf32, #tpu.memory_space<smem>>) -> (i32, i32, i32) {
    %c0_i32 = arith.constant 0 : i32
    %c0_i32_0 = arith.constant 0 : i32
    %c0_i32_1 = arith.constant 0 : i32
    %c0_i32_2 = arith.constant 0 : i32
    return %c0_i32, %c0_i32_0, %c0_i32_1 : i32, i32, i32
  }
  func.func @transform_1(%arg0: i32, %arg1: memref<2xf32, #tpu.memory_space<smem>>) -> (i32, i32, i32) {
    %c0_i32 = arith.constant 0 : i32
    %c0_i32_0 = arith.constant 0 : i32
    %c0_i32_1 = arith.constant 0 : i32
    %c0_i32_2 = arith.constant 0 : i32
    return %c0_i32, %c0_i32_0, %c0_i32_1 : i32, i32, i32
  }
  func.func @transform_2(%arg0: i32, %arg1: memref<2xf32, #tpu.memory_space<smem>>) -> (i32, i32) {
    %c0_i32 = arith.constant 0 : i32
    %c0_i32_0 = arith.constant 0 : i32
    %c0_i32_1 = arith.constant 0 : i32
    return %c0_i32, %c0_i32_0 : i32, i32
  }
  func.func @transform_3(%arg0: i32, %arg1: memref<2xf32, #tpu.memory_space<smem>>) -> (i32, i32, i32) {
    %c0_i32 = arith.constant 0 : i32
    %c0_i32_0 = arith.constant 0 : i32
    %c0_i32_1 = arith.constant 0 : i32
    %c0_i32_2 = arith.constant 0 : i32
    return %c0_i32, %c0_i32_0, %c0_i32_1 : i32, i32, i32
  }
  func.func @transform_4(%arg0: i32, %arg1: memref<2xf32, #tpu.memory_space<smem>>) -> (i32, i32) {
    %c0_i32 = arith.constant 0 : i32
    %c0_i32_0 = arith.constant 0 : i32
    %c0_i32_1 = arith.constant 0 : i32
    return %c0_i32, %c0_i32_0 : i32, i32
  }
  func.func @transform_5(%arg0: i32, %arg1: memref<2xf32, #tpu.memory_space<smem>>) -> (i32, i32, i32) {
    %c0_i32 = arith.constant 0 : i32
    %c0_i32_0 = arith.constant 0 : i32
    %c0_i32_1 = arith.constant 0 : i32
    %c0_i32_2 = arith.constant 0 : i32
    return %c0_i32, %c0_i32_0, %c0_i32_1 : i32, i32, i32
  }
}

</mosaic_0001>

<llo_original>
// kernel: decoding_block_forward.1
$region0: #{decoding_block_forward.1}
  #allocation0 [shape = 'u32[]', space=smem, size = 0x4, offset = 0x4, fixed_abs, tag = 'smem constant byte address 0x4 - core index']
  #allocation1 [shape = 'u32[144,128]{1,0:T(1,128)}', space=vmem, size = 0x12000, scoped, tag = 'internal scratch']
  #allocation2 [shape = 'f32[1,16,132]{2,1,0:T(8,128)}', space=vmem, size = 0x4000, scoped, tag = 'scratch operand']
  #allocation3 [shape = 'f32[1,8,132]{2,1,0:T(8,128)}', space=vmem, size = 0x2000, scoped, tag = 'scratch operand']
  #allocation4 [shape = 's32[1]{0}', space=sflag, size = 0x4, scoped, tag = 'scoped memory for decoding_block_forward.1']
  #allocation5 [shape = 'u8[512]{0}', space=smem, size = 0x200, scoped, tag = 'prefetched SMEM operand 0']
  %s0 = inlined_call_operand.vmem [shape: f32[2], index: 0, kind: input, shape index: {}]
  %s1 = inlined_call_operand.vmem [shape: f32[2,16,16], index: 1, kind: input, shape index: {}]
  %s2 = inlined_call_operand.vmem [shape: bf16[3,8,48], index: 2, kind: input, shape index: {}]
  %s3 = inlined_call_operand.vmem [shape: f32[8,1], index: 3, kind: input, shape index: {}]
  %s4 = inlined_call_operand.vmem [shape: bf16[3,4,24], index: 4, kind: input, shape index: {}]
  %s5 = inlined_call_operand.vmem [shape: f32[4,1], index: 5, kind: input, shape index: {}]
  %s6 = inlined_call_operand.vmem [shape: f32[1,4,128], index: 6, kind: output, shape index: {}]
  %s7 = sld [smem:[#allocation0]]
  $region30: #{decoding_block_forward.1} parent=0
    _
  %s9 = ssub.s32 1, %s7
  %s10 = scalar_select 0, %s9, %s7
  %s11 = sshll.u32 %s0, 4
  %s12 = int_to_ptr.vmem [resolvable:$true] %s11
  %14 = dma.vmem_to_smem %s12, 16, [#allocation5], [#allocation4]
  %15 = dma.done [#allocation4], 16
  %16 = sfence
  // Predicated region
  $region2: #{decoding_block_forward.1} parent=0 // pred_check
    _
  $region3: #{decoding_block_forward.1} parent=0 // pred_check_branch
    %18 = sbr.rel (0) target = $region5
  $region4: #{decoding_block_forward.1} parent=0 // pred_region
    _
  $region5: #{decoding_block_forward.1} parent=0 // pred_fallthru
    _
  // Predicated region
  $region6: #{decoding_block_forward.1} parent=0 // pred_check
    _
  $region7: #{decoding_block_forward.1} parent=0 // pred_check_branch
    %20 = sbr.rel (0) target = $region9
  $region8: #{decoding_block_forward.1} parent=0 // pred_region
    _
  $region9: #{decoding_block_forward.1} parent=0 // pred_fallthru
    _
  // Predicated region
  $region10: #{decoding_block_forward.1} parent=0 // pred_check
    _
  $region11: #{decoding_block_forward.1} parent=0 // pred_check_branch
    %22 = sbr.rel (0) target = $region13
  $region12: #{decoding_block_forward.1} parent=0 // pred_region
    _
  $region13: #{decoding_block_forward.1} parent=0 // pred_fallthru
    _
  // Predicated region
  $region14: #{decoding_block_forward.1} parent=0 // pred_check
    _
  $region15: #{decoding_block_forward.1} parent=0 // pred_check_branch
    %24 = sbr.rel (0) target = $region17
  $region16: #{decoding_block_forward.1} parent=0 // pred_region
    _
  $region17: #{decoding_block_forward.1} parent=0 // pred_fallthru
    _
  // Predicated region
  $region18: #{decoding_block_forward.1} parent=0 // pred_check
    _
  $region19: #{decoding_block_forward.1} parent=0 // pred_check_branch
    %26 = sbr.rel (0) target = $region21
  $region20: #{decoding_block_forward.1} parent=0 // pred_region
    _
  $region21: #{decoding_block_forward.1} parent=0 // pred_fallthru
    _
  %v28 = vlaneseq
  %v29 = vand.u32 %v28, 127
  %30 = vst [vmem:[#allocation2] sm:$0xff] 0.0
  %vm31 = vcmask 31744
  %32 = vst.msk [vmem:[#allocation2 + $0x8] sm:$0xff] %vm31, 0.0
  %33 = vst [vmem:[#allocation2 + $0x10] sm:$0xff] 0.0
  %34 = vst.msk [vmem:[#allocation2 + $0x18] sm:$0xff] %vm31, 0.0
  %v35 = vld [vmem:[%s1] sm:$0xff]
  %v36 = vld [vmem:[%s1 + $0x8] sm:$0xff]
  %39 = vrot.lane.b32.xlu0 %v35, 4
  %v40 = vpop.permute.xlu0 %39
  %41 = vrot.lane.b32.xlu0 %v36, 4
  %v42 = vpop.permute.xlu0 %41
  %vm45 = vcmask 162848
  %46 = vst.msk [vmem:[#allocation2] sm:$0xff] %vm45, %v40
  %47 = vst.msk [vmem:[#allocation2 + $0x10] sm:$0xff] %vm45, %v42
  %s48 = scalar_lea.vmem %s1, 16
  %v49 = vld [vmem:[%s48] sm:$0xff]
  %v50 = vld [vmem:[%s48 + $0x8] sm:$0xff]
  %53 = vrot.lane.b32.xlu0 %v49, 22
  %v54 = vpop.permute.xlu0 %53
  %55 = vrot.lane.b32.xlu0 %v50, 22
  %v56 = vpop.permute.xlu0 %55
  %vm59 = vcmask 310448
  %60 = vst.msk [vmem:[#allocation2] sm:$0xff] %vm59, %v54
  %61 = vst.msk [vmem:[#allocation2 + $0x10] sm:$0xff] %vm59, %v56
  %s62 = sld [smem:[#allocation5]]
  %63 = vst [vmem:[#allocation3] sm:$0xff] 0.0
  %64 = vst.msk [vmem:[#allocation3 + $0x8] sm:$0xff] %vm31, 0.0
  %vm65 = vcmp.ge.s32.totalorder %v29, 2
  %vm66 = vcmp.lt.s32.totalorder %v29, 18
  %vm67 = vmand %vm65, %vm66
  %vm68 = vcmp.ge.s32.totalorder %v29, 20
  %vm69 = vcmp.lt.s32.totalorder %v29, 36
  %vm70 = vmand %vm68, %vm69
  %vm71 = vmor %vm67, %vm70
  %v72 = vld [vmem:[#allocation2] sm:$0xff]
  %v73 = vld [vmem:[#allocation2 + $0x8] sm:$0xff]
  %v74 = vld [vmem:[#allocation2 + $0x10] sm:$0xff]
  %v75 = vld [vmem:[#allocation2 + $0x18] sm:$0xff]
  %80 = vrot.lane.b32.xlu0 %v72, 127
  %v81 = vpop.permute.xlu0 %80
  %82 = vrot.lane.b32.xlu0 %v73, 127
  %v83 = vpop.permute.xlu0 %82
  %84 = vrot.lane.b32.xlu0 %v74, 127
  %v85 = vpop.permute.xlu0 %84
  %86 = vrot.lane.b32.xlu0 %v75, 127
  %v87 = vpop.permute.xlu0 %86
  %vm88 = vcmask 1039360
  %v89 = vsel %vm88, %v81, %v83
  %v90 = vsel %vm88, %v85, %v87
  %95 = vrot.lane.b32.xlu0 %v72, 126
  %v96 = vpop.permute.xlu0 %95
  %97 = vrot.lane.b32.xlu0 %v73, 126
  %v98 = vpop.permute.xlu0 %97
  %99 = vrot.lane.b32.xlu0 %v74, 126
  %v100 = vpop.permute.xlu0 %99
  %101 = vrot.lane.b32.xlu0 %v75, 126
  %v102 = vpop.permute.xlu0 %101
  %vm103 = vcmask 1031168
  %v104 = vsel %vm103, %v96, %v98
  %v105 = vsel %vm103, %v100, %v102
  %s110 = scalar_lea.vmem %s2, 4
  %v111 = vld [vmem:[%s110] sm:$0xf]
  %v112 = vpack.c.bf16 %v74, %v72
  %v113 = vpack.c.bf16 %v75, %v73
  %v114 = vpack.c.bf16 %v90, %v89
  %v115 = vpack.c.bf16 %v87, %v83
  %v116 = vpack.c.bf16 %v105, %v104
  %v117 = vpack.c.bf16 %v102, %v98
  %v118 = vld [vmem:[%s3] sm:$0xff]
  %120 = vset.pattern.permute.xlu0 0
  %121 = vperm.xlu0 %120, %v118
  %v122 = vpop.permute.xlu0 %121
  %130 = vrot.lane.b32.xlu0 %v112, 127
  %v131 = vpop.permute.xlu0 %130
  %132 = vrot.lane.b32.xlu0 %v113, 127
  %v133 = vpop.permute.xlu0 %132
  %134 = vrot.lane.b32.xlu0 %v114, 127
  %v135 = vpop.permute.xlu0 %134
  %136 = vrot.lane.b32.xlu0 %v115, 127
  %v137 = vpop.permute.xlu0 %136
  %138 = vrot.lane.b32.xlu0 %v116, 127
  %v139 = vpop.permute.xlu0 %138
  %140 = vrot.lane.b32.xlu0 %v117, 127
  %v141 = vpop.permute.xlu0 %140
  %vm142 = vcmask 1039360
  %v143 = vsel %vm142, %v131, %v133
  %v144 = vsel %vm142, %v135, %v137
  %v145 = vsel %vm142, %v139, %v141
  %vm149 = vcmask 392192
  %v151 = vsel %vm149, %v111, 0
  %153 = vmatprep.subr.bf16.mxu0 0
  %154 = vmatpush1.bf16.msra.mxu0 %v143
  %155 = vmatprep.subr.bf16.mxu0 0
  %156 = vmatpush1.bf16.msra.mxu0 %v144
  %157 = vmatprep.subr.bf16.mxu0 0
  %158 = vmatpush1.bf16.msra.mxu0 %v145
  %159 = vmatprep.subr.bf16.mxu0 0
  %160 = vmatpush1.bf16.msra.mxu0 0
  %161 = vmatprep.subr.bf16.mxu0 0
  %162 = vmatpush1.bf16.msra.mxu0 0
  %163 = vmatprep.subr.bf16.mxu0 0
  %164 = vmatpush1.bf16.msra.mxu0 0
  %165 = vmatprep.subr.bf16.mxu0 0
  %166 = vmatpush1.bf16.msra.mxu0 0
  %167 = vmatprep.subr.bf16.mxu0 0
  %168 = vmatpush1.bf16.msra.mxu0 0
  %169 = vmatprep.subr.bf16.mxu0 0
  %170 = vmatpush1.bf16.msra.mxu0 0
  %171 = vmatprep.subr.bf16.mxu0 0
  %172 = vmatpush1.bf16.msra.mxu0 0
  %173 = vmatprep.subr.bf16.mxu0 0
  %174 = vmatpush1.bf16.msra.mxu0 0
  %175 = vmatprep.subr.bf16.mxu0 0
  %176 = vmatpush1.bf16.msra.mxu0 0
  %177 = vmatprep.subr.bf16.mxu0 0
  %178 = vmatpush1.bf16.msra.mxu0 0
  %179 = vmatprep.subr.bf16.mxu0 0
  %180 = vmatpush1.bf16.msra.mxu0 0
  %181 = vmatprep.subr.bf16.mxu0 0
  %182 = vmatpush1.bf16.msra.mxu0 0
  %183 = vmatprep.subr.bf16.mxu0 0
  %184 = vmatpush1.bf16.msra.mxu0 0
  %185 = vmatprep.mubr.bf16.mxu0 0
  %186 = vmatmul.mubr.bf16.gmra.mrb[0].mxu0 %v151
  %v187 = vpop.f32.mrb[0].mxu0
  %v188 = vadd.f32 %v122, %v187
  %v189 = vpop.f32.mrb[0].mxu0
  %v190 = vpop.f32.mrb[0].mxu0
  %v191 = vpop.f32.mrb[0].mxu0
  %192 = vdwg.mxu0
  %vm193 = vcmp.gt.f32.partialorder %v188, 0.0
  %v194 = vstv %s62
  %v195 = vmul.f32 %v194, %v188
  %v196 = vsel %vm193, %v188, %v195
  %v197 = vsel %vm71, 1, 0
  %vm198 = vcmp.eq.s32.totalorder %v197, 1
  %v199 = vsel %vm198, %v196, 0.0
  %201 = vrot.lane.b32.xlu0 %v199, 2
  %v202 = vpop.permute.xlu0 %201
  %vm204 = vcmask 1047568
  %205 = vst.msk [vmem:[#allocation3] sm:$0xff] %vm204, %v202
  %vm206 = vcmask 15360
  %207 = vst.msk [vmem:[#allocation3 + $0x8] sm:$0xff] %vm206, %v202
  %s208 = sld [smem:[#allocation5 + $0x1]]
  %v209 = vld [vmem:[#allocation3] sm:$0xff]
  %v210 = vld [vmem:[#allocation3 + $0x8] sm:$0xff]
  %213 = vrot.lane.b32.xlu0 %v209, 126
  %v214 = vpop.permute.xlu0 %213
  %215 = vrot.lane.b32.xlu0 %v210, 126
  %v216 = vpop.permute.xlu0 %215
  %v217 = vsel %vm103, %v214, %v216
  %219 = vrot.lane.b32.xlu0 %v209, 124
  %v220 = vpop.permute.xlu0 %219
  %221 = vrot.lane.b32.xlu0 %v210, 124
  %v222 = vpop.permute.xlu0 %221
  %vm223 = vcmask 1014784
  %v224 = vsel %vm223, %v220, %v222
  %s226 = scalar_lea.vmem %s4, 2
  %v227 = vld [vmem:[%s226] sm:$0x3]
  %v228 = vpack.c.bf16 %v217, %v209
  %v229 = vpack.c.bf16 %v224, %v224
  %v230 = vld [vmem:[%s5] sm:$0xf]
  %232 = vset.pattern.permute.xlu0 0
  %233 = vperm.xlu0 %232, %v230
  %v234 = vpop.permute.xlu0 %233
  %vm236 = vcmask 195584
  %v238 = vsel %vm236, %v227, 0
  %vm240 = vcmask 1043456
  %v242 = vsel %vm240, %v229, 0
  %244 = vmatprep.subr.bf16.mxu0 0
  %245 = vmatpush1.bf16.msra.mxu0 %v228
  %246 = vmatprep.subr.bf16.mxu0 0
  %247 = vmatpush1.bf16.msra.mxu0 %v242
  %248 = vmatprep.subr.bf16.mxu0 0
  %249 = vmatpush1.bf16.msra.mxu0 0
  %250 = vmatprep.subr.bf16.mxu0 0
  %251 = vmatpush1.bf16.msra.mxu0 0
  %252 = vmatprep.subr.bf16.mxu0 0
  %253 = vmatpush1.bf16.msra.mxu0 0
  %254 = vmatprep.subr.bf16.mxu0 0
  %255 = vmatpush1.bf16.msra.mxu0 0
  %256 = vmatprep.subr.bf16.mxu0 0
  %257 = vmatpush1.bf16.msra.mxu0 0
  %258 = vmatprep.subr.bf16.mxu0 0
  %259 = vmatpush1.bf16.msra.mxu0 0
  %260 = vmatprep.subr.bf16.mxu0 0
  %261 = vmatpush1.bf16.msra.mxu0 0
  %262 = vmatprep.subr.bf16.mxu0 0
  %263 = vmatpush1.bf16.msra.mxu0 0
  %264 = vmatprep.subr.bf16.mxu0 0
  %265 = vmatpush1.bf16.msra.mxu0 0
  %266 = vmatprep.subr.bf16.mxu0 0
  %267 = vmatpush1.bf16.msra.mxu0 0
  %268 = vmatprep.subr.bf16.mxu0 0
  %269 = vmatpush1.bf16.msra.mxu0 0
  %270 = vmatprep.subr.bf16.mxu0 0
  %271 = vmatpush1.bf16.msra.mxu0 0
  %272 = vmatprep.subr.bf16.mxu0 0
  %273 = vmatpush1.bf16.msra.mxu0 0
  %274 = vmatprep.subr.bf16.mxu0 0
  %275 = vmatpush1.bf16.msra.mxu0 0
  %276 = vmatprep.mubr.bf16.mxu0 0
  %277 = vmatmul.mubr.bf16.gmra.mrb[0].mxu0 %v238
  %v278 = vpop.f32.mrb[0].mxu0
  %v279 = vadd.f32 %v234, %v278
  %v280 = vpop.f32.mrb[0].mxu0
  %v281 = vpop.f32.mrb[0].mxu0
  %v282 = vpop.f32.mrb[0].mxu0
  %283 = vdwg.mxu0
  %vm284 = vcmp.gt.f32.partialorder %v279, 0.0
  %v285 = vstv %s208
  %v286 = vmul.f32 %v285, %v279
  %v287 = vsel %vm284, %v279, %v286
  %288 = vst [vmem:[%s6] sm:$0xf] %v287
  // Predicated region
  $region22: #{decoding_block_forward.1} parent=0 // pred_check
    _
  $region23: #{decoding_block_forward.1} parent=0 // pred_check_branch
    %290 = sbr.rel (0) target = $region25
  $region24: #{decoding_block_forward.1} parent=0 // pred_region
    _
  $region25: #{decoding_block_forward.1} parent=0 // pred_fallthru
    _
  // Predicated region
  $region26: #{decoding_block_forward.1} parent=0 // pred_check
    _
  $region27: #{decoding_block_forward.1} parent=0 // pred_check_branch
    %292 = sbr.rel (0) target = $region29
  $region28: #{decoding_block_forward.1} parent=0 // pred_region
    _
  $region29: #{decoding_block_forward.1} parent=0 // pred_fallthru
    _

</llo_original>
